<compile_context>
chip_gen: v7x
topology: tpu7x:2x2x1
jax: 0.10.0
libtpu: 0.0.40
codegen_flags: <defaults>
</compile_context>

<pallas_src>
import jax
import jax.numpy as jnp
from jax.experimental import pallas as pl
from jax.experimental.pallas import tpu as pltpu


def _round_up(x, m):
    return (x + m - 1) // m * m


def _pick_tk(h_pad, tk_max):
    """Largest K tile that exactly divides h_pad (no partial K blocks ever)."""
    if h_pad % 128 != 0:
        # Small / odd hidden size: a single full-dim K block (allowed by the
        # (8,128) rule when the block equals the full array dim).
        return h_pad
    best = 128
    c = 128
    while c <= min(tk_max, h_pad):
        if h_pad % c == 0:
            best = c
        c += 128
    return best


# ---------------------------------------------------------------------------
# One-time parameter relayout (call at init, NOT per forward step).
# ---------------------------------------------------------------------------
def prepare_decoder_params(weight, bias, *, max_tk=512, param_dtype=None):
    """weight: (V, H) PyTorch layout; bias: (V,).

    Returns (w_hv, b_row):
      w_hv  : (H_pad, V_pad) weight, transposed + zero padded, lane-aligned.
      b_row : (1, V_pad) float32 bias row.
    Reduction-axis (H) padding is exact (zeros); V padding only adds columns
    that are sliced off after the kernel.
    """
    V, H = weight.shape
    H_pad = H if (H % 128 == 0 or H <= max_tk) else _round_up(H, 128)
    V_pad = _round_up(V, 128)          # lane-dense, unmasked output stores

    w = jnp.asarray(weight).T          # (H, V) — MXU-natural (K, N) layout
    if (H_pad, V_pad) != (H, V):
        w = jnp.pad(w, ((0, H_pad - H), (0, V_pad - V)))
    if param_dtype is not None:        # e.g. jnp.bfloat16 on v6e/v7x
        w = w.astype(param_dtype)

    b = jnp.asarray(bias)
    if V_pad != V:
        b = jnp.pad(b, (0, V_pad - V))
    b_row = b.reshape(1, V_pad).astype(jnp.float32)
    return w, b_row


# ---------------------------------------------------------------------------
# Kernels
# ---------------------------------------------------------------------------
def _kernel_f32_out(x_ref, w_ref, b_ref, o_ref):
    # float32 output: accumulate directly into the resident output block.
    k = pl.program_id(2)

    @pl.when(k == 0)
    def _():
        o_ref[...] = jnp.broadcast_to(b_ref[...], o_ref.shape)

    o_ref[...] += jnp.dot(
        x_ref[...], w_ref[...], preferred_element_type=jnp.float32
    )


def _kernel_acc_scratch(x_ref, w_ref, b_ref, o_ref, acc_ref):
    # Non-f32 output: f32 VMEM accumulator, cast + bias in the epilogue.
    k = pl.program_id(2)

    @pl.when(k == 0)
    def _():
        acc_ref[...] = jnp.zeros_like(acc_ref)

    acc_ref[...] += jnp.dot(
        x_ref[...], w_ref[...], preferred_element_type=jnp.float32
    )

    @pl.when(k == pl.num_programs(2) - 1)
    def _():
        o_ref[...] = (acc_ref[...] + b_ref[...]).astype(o_ref.dtype)


# ---------------------------------------------------------------------------
# Forward wrapper
# ---------------------------------------------------------------------------
def decoder_linear(output, w_hv, b_row, vocab_size, *, tm=512, tn=1024, tk=512):
    """output: (B, T, H); w_hv/b_row from prepare_decoder_params.

    Returns (B, T, vocab_size) = reshape(Linear(flatten(output))).
    """
    B, T, H = output.shape
    H_pad, V_pad = w_hv.shape
    assert H_pad >= H and b_row.shape == (1, V_pad)
    M = B * T

    x2d = output.reshape(M, H)
    # Only the reduction axis needs exact zero padding (partial K blocks
    # would corrupt valid outputs). M / V partial blocks are harmless.
    if H_pad != H:
        x2d = jnp.pad(x2d, ((0, 0), (0, H_pad - H)))

    TM = min(tm, _round_up(M, 8))
    TN = min(tn, V_pad)
    TK = _pick_tk(H_pad, tk)

    # v7x megacore: when M fits in one TM tile (decode), keep >=2 V tiles so
    # both TensorCores get work along the "parallel" V axis.
    if M <= TM and V_pad >= 256:
        TN = min(TN, _round_up(pl.cdiv(V_pad, 2), 128))

    grid_m = pl.cdiv(M, TM)
    grid_n = pl.cdiv(V_pad, TN)
    grid_k = H_pad // TK
    grid = (grid_m, grid_n, grid_k)

    out_dtype = output.dtype
    if out_dtype == jnp.float32:
        kernel = _kernel_f32_out
        scratch_shapes = ()
    else:
        kernel = _kernel_acc_scratch
        scratch_shapes = (pltpu.VMEM((TM, TN), jnp.float32),)

    x_item = jnp.dtype(x2d.dtype).itemsize
    w_item = jnp.dtype(w_hv.dtype).itemsize
    o_item = jnp.dtype(out_dtype).itemsize
    bytes_accessed = (
        grid_n * M * H_pad * x_item        # activations re-streamed per V tile
        + grid_m * H_pad * V_pad * w_item  # weight re-streamed per M tile
        + M * V_pad * o_item               # output written once
        + V_pad * 4                        # bias
    )

    out2d = pl.pallas_call(
        kernel,
        out_shape=jax.ShapeDtypeStruct((M, V_pad), out_dtype),
        grid=grid,
        in_specs=[
            pl.BlockSpec((TM, TK), lambda i, j, k: (i, k)),   # activations
            pl.BlockSpec((TK, TN), lambda i, j, k: (k, j)),   # weight (H, V)
            pl.BlockSpec((1, TN), lambda i, j, k: (0, j)),    # bias row
            # NOTE: if profiling shows exposed DMA at k-step boundaries, add
            # pipeline_mode=pl.Buffered(3) on the weight spec (VMEM allows it).
        ],
        out_specs=pl.BlockSpec((TM, TN), lambda i, j, k: (i, j)),
        scratch_shapes=scratch_shapes,
        compiler_params=pltpu.CompilerParams(
            dimension_semantics=("parallel", "parallel", "arbitrary"),
            vmem_limit_bytes=48 * 1024 * 1024,   # >defaults, <64MiB v7x physical
        ),
        cost_estimate=pl.CostEstimate(
            flops=2 * M * H_pad * V_pad,
            transcendentals=0,
            bytes_accessed=bytes_accessed,
        ),
    )(x2d, w_hv, b_row)

    if V_pad != vocab_size:
        out2d = out2d[:, :vocab_size]
    return out2d.reshape(B, T, vocab_size)


if __name__ == "__main__":
    # Small shapes implied by the module: (batch, seq, nhid) -> (batch, seq, vocab)
    B, T, H, V = 2, 8, 32, 64
    initrange = 0.1

    key = jax.random.PRNGKey(0)
    k_x, k_w = jax.random.split(key)

    x = jax.random.normal(k_x, (B, T, H), dtype=jnp.float32)

    # Deterministic parameter init mirroring init_weights():
    #   weight ~ U(-initrange, initrange), bias = 0
    weight = jax.random.uniform(
        k_w, (V, H), minval=-initrange, maxval=initrange, dtype=jnp.float32
    )
    bias = jnp.zeros((V,), dtype=jnp.float32)

    # One-time (init-time) relayout; not part of the per-step forward path.
    # For bf16 weight streaming on v6e/v7x pass param_dtype=jnp.bfloat16.
    w_hv, b_row = prepare_decoder_params(weight, bias)

    out = decoder_linear(x, w_hv, b_row, V)
    out = jax.block_until_ready(out)

    # Reference check against plain JAX (same math as nn.Linear)
    ref = (x.reshape(B * T, H) @ weight.T + bias).reshape(B, T, V)
    assert out.shape == (B, T, V)
    assert jnp.allclose(out, ref, atol=1e-5, rtol=1e-5)

    print("KERNEL_OK")
</pallas_src>

<mosaic_0001>
module attributes {stable_mosaic.version = 11 : i64} {
  func.func @_kernel_f32_out(%arg0: i32, %arg1: i32, %arg2: i32, %arg3: memref<16x32xf32, #tpu.memory_space<vmem>>, %arg4: memref<32x128xf32, #tpu.memory_space<vmem>>, %arg5: memref<1x128xf32, #tpu.memory_space<vmem>>, %arg6: memref<16x128xf32, #tpu.memory_space<vmem>>) attributes {dimension_semantics = [#tpu.dimension_semantics<parallel>, #tpu.dimension_semantics<parallel>, #tpu.dimension_semantics<arbitrary>], iteration_bounds = array<i64: 1, 1, 1>, scalar_prefetch = 0 : i64, scratch_operands = 0 : i64, tpu.core_type = #tpu.core_type<tc>, window_params = [{transform_indices = @transform_0, window_bounds = array<i64: 16, 32>}, {transform_indices = @transform_1, window_bounds = array<i64: 32, 128>}, {transform_indices = @transform_2, window_bounds = array<i64: 1, 128>}, {transform_indices = @transform_3, window_bounds = array<i64: 16, 128>}]} {
    %c0_i32 = arith.constant 0 : i32
    %0 = arith.cmpi eq, %arg2, %c0_i32 : i32
    %1 = arith.extui %0 : i1 to i32
    %c0_i32_0 = arith.constant 0 : i32
    %2 = arith.cmpi ne, %1, %c0_i32_0 : i32
    scf.if %2 {
      %c0_8 = arith.constant 0 : index
      %c0_9 = arith.constant 0 : index
      %9 = vector.load %arg5[%c0_8, %c0_9] : memref<1x128xf32, #tpu.memory_space<vmem>>, vector<1x128xf32>
      %10 = vector.shape_cast %9 : vector<1x128xf32> to vector<1x128xf32>
      %11 = vector.broadcast %10 : vector<1x128xf32> to vector<16x128xf32>
      %c0_10 = arith.constant 0 : index
      %c0_11 = arith.constant 0 : index
      %12 = vector.load %arg6[%c0_10, %c0_11] : memref<16x128xf32, #tpu.memory_space<vmem>>, vector<16x128xf32>
      tpu.vector_store %arg6[%c0_10, %c0_11], %11 {strides = array<i32>} : memref<16x128xf32, #tpu.memory_space<vmem>>, vector<16x128xf32>,
    } else {
    }
    %c0 = arith.constant 0 : index
    %c0_1 = arith.constant 0 : index
    %3 = vector.load %arg6[%c0, %c0_1] : memref<16x128xf32, #tpu.memory_space<vmem>>, vector<16x128xf32>
    %c0_2 = arith.constant 0 : index
    %c0_3 = arith.constant 0 : index
    %4 = vector.load %arg3[%c0_2, %c0_3] : memref<16x32xf32, #tpu.memory_space<vmem>>, vector<16x32xf32>
    %c0_4 = arith.constant 0 : index
    %c0_5 = arith.constant 0 : index
    %5 = vector.load %arg4[%c0_4, %c0_5] : memref<32x128xf32, #tpu.memory_space<vmem>>, vector<32x128xf32>
    %cst = arith.constant dense<0.000000e+00> : vector<16x128xf32>
    %6 = tpu.matmul %4, %5, %cst {dimension_numbers = #tpu.dot_dimension_numbers<[1], [0], [0], [1], [0, 0, 1, 1], [], []>} : vector<16x32xf32>, vector<32x128xf32>, vector<16x128xf32> -> vector<16x128xf32>
    %7 = arith.addf %3, %6 : vector<16x128xf32>
    %c0_6 = arith.constant 0 : index
    %c0_7 = arith.constant 0 : index
    %8 = vector.load %arg6[%c0_6, %c0_7] : memref<16x128xf32, #tpu.memory_space<vmem>>, vector<16x128xf32>
    tpu.vector_store %arg6[%c0_6, %c0_7], %7 {strides = array<i32>} : memref<16x128xf32, #tpu.memory_space<vmem>>, vector<16x128xf32>,
    return
  }
  func.func @transform_0(%arg0: i32, %arg1: i32, %arg2: i32) -> (i32, i32) {
    %c0_i32 = arith.constant 0 : i32
    return %arg0, %arg2 : i32, i32
  }
  func.func @transform_1(%arg0: i32, %arg1: i32, %arg2: i32) -> (i32, i32) {
    %c0_i32 = arith.constant 0 : i32
    return %arg2, %arg1 : i32, i32
  }
  func.func @transform_2(%arg0: i32, %arg1: i32, %arg2: i32) -> (i32, i32) {
    %c0_i32 = arith.constant 0 : i32
    %c0_i32_0 = arith.constant 0 : i32
    return %c0_i32, %arg1 : i32, i32
  }
  func.func @transform_3(%arg0: i32, %arg1: i32, %arg2: i32) -> (i32, i32) {
    %c0_i32 = arith.constant 0 : i32
    return %arg0, %arg1 : i32, i32
  }
}

</mosaic_0001>

<llo_original>
// kernel: tpu_custom_call.1
$region0: #{tpu_custom_call.1}
  #allocation0 [shape = 'u32[]', space=smem, size = 0x4, offset = 0x4, fixed_abs, tag = 'smem constant byte address 0x4 - core index']
  #allocation1 [shape = 'u32[144,128]{1,0:T(1,128)}', space=vmem, size = 0x12000, scoped, tag = 'internal scratch']
  %s0 = inlined_call_operand.hbm [shape: f32[16,32], index: 0, kind: input, shape index: {}]
  %s1 = inlined_call_operand.hbm [shape: f32[32,128], index: 1, kind: input, shape index: {}]
  %s2 = inlined_call_operand.vmem [shape: f32[1,128], index: 2, kind: input, shape index: {}]
  %s3 = inlined_call_operand.hbm [shape: f32[16,128], index: 3, kind: output, shape index: {}]
  %s4 = sld [smem:[#allocation0]]
  $region34: #{tpu_custom_call.1} parent=0
    _
  %s6 = ssub.s32 1, %s4
  %s7 = scalar_select 0, %s6, %s4
  $region1: #{tpu_custom_call.1} parent=0
    #allocation2 [shape = 'u8[8192]{0}', space=vmem, size = 0x2000, scoped, tag = 'input window, operand 0, single buffered']
    #allocation3 [shape = 's32[1]{0}', space=sflag, size = 0x4, scoped, tag = 'scoped memory for tpu_custom_call.1']
    #allocation4 [shape = 's32[1]{0}', space=sflag, size = 0x4, scoped, tag = 'scoped memory for tpu_custom_call.1']
    #allocation5 [shape = 'u8[16384]{0}', space=vmem, size = 0x4000, scoped, tag = 'input window, operand 1, single buffered']
    #allocation6 [shape = 's32[1]{0}', space=sflag, size = 0x4, scoped, tag = 'scoped memory for tpu_custom_call.1']
    #allocation7 [shape = 'u8[8192]{0}', space=vmem, size = 0x2000, scoped, tag = 'output window, operand 0, single buffered']
    %8 = vsyncpa [#allocation3], 0
    %9 = vsyncpa [#allocation6], 0
    %10 = vsyncpa [#allocation4], 0
    // Predicated region
    $region2: #{tpu_custom_call.1} parent=1 // pred_check
      _
    $region3: #{tpu_custom_call.1} parent=1 // pred_check_branch
      %12 = sbr.rel (0) target = $region5
    $region4: #{tpu_custom_call.1} parent=1 // pred_region
      %s14 = ssub.s32 256, 256
      %15 = vsyncadd [#allocation3], %s14
      %s16 = sshll.u32 [#allocation2], 4
      %s17 = int_to_ptr.vmem [resolvable:$true] %s16
      %22 = dma.hbm_to_vmem [thread:$0]  %s0, 256, %s17, [#allocation3], 128, 128, 8
    $region5: #{tpu_custom_call.1} parent=1 // pred_fallthru
      _
    // Predicated region
    $region6: #{tpu_custom_call.1} parent=1 // pred_check
      _
    $region7: #{tpu_custom_call.1} parent=1 // pred_check_branch
      %24 = sbr.rel (0) target = $region9
    $region8: #{tpu_custom_call.1} parent=1 // pred_region
      %s26 = ssub.s32 512, 512
      %27 = vsyncadd [#allocation6], %s26
      %s28 = sshll.u32 [#allocation5], 4
      %s29 = int_to_ptr.vmem [resolvable:$true] %s28
      %34 = dma.hbm_to_vmem [thread:$0]  %s1, 512, %s29, [#allocation6], 128, 128, 8
    $region9: #{tpu_custom_call.1} parent=1 // pred_fallthru
      _
    // Predicated region
    $region10: #{tpu_custom_call.1} parent=1 // pred_check
      _
    $region11: #{tpu_custom_call.1} parent=1 // pred_check_branch
      %36 = sbr.rel (0) target = $region13
    $region12: #{tpu_custom_call.1} parent=1 // pred_region
      _
    $region13: #{tpu_custom_call.1} parent=1 // pred_fallthru
      _
    // Predicated region
    $region14: #{tpu_custom_call.1} parent=1 // pred_check
      _
    $region15: #{tpu_custom_call.1} parent=1 // pred_check_branch
      %38 = sbr.rel (0) target = $region17
    $region16: #{tpu_custom_call.1} parent=1 // pred_region
      %39 = dma.done [#allocation3], 256
    $region17: #{tpu_custom_call.1} parent=1 // pred_fallthru
      _
    // Predicated region
    $region18: #{tpu_custom_call.1} parent=1 // pred_check
      _
    $region19: #{tpu_custom_call.1} parent=1 // pred_check_branch
      %41 = sbr.rel (0) target = $region21
    $region20: #{tpu_custom_call.1} parent=1 // pred_region
      %42 = dma.done [#allocation6], 512
    $region21: #{tpu_custom_call.1} parent=1 // pred_fallthru
      _
    %p43 = scmp.eq.s32.totalorder 0, 0
    // Predicated region
    $region22: #{tpu_custom_call.1} parent=1 // pred_check
      %p44 = pneg %p43
    $region23: #{tpu_custom_call.1} parent=1 // pred_check_branch
      %46 = sbr.rel (%p44) target = $region25
    $region24: #{tpu_custom_call.1} parent=1 // pred_region
      %v47 = vld [vmem:[%s2] sm:$0x1]
      %v49 = vlaneseq
      %v50 = vshrl.u32 %v49, 7
      %v51 = vsub.s32 0, %v50
      %v52 = vrot.slane %v47, %v51
      %54 = vst [vmem:[#allocation7] sm:$0xff] %v52
      %55 = vst [vmem:[#allocation7 + $0x8] sm:$0xff] %v52
    $region25: #{tpu_custom_call.1} parent=1 // pred_fallthru
      _
    %v56 = vld [vmem:[#allocation7] sm:$0xff]
    %v57 = vld [vmem:[#allocation7 + $0x8] sm:$0xff]
    %v58 = vld [vmem:[#allocation2] sm:$0xff]
    %v59 = vld [vmem:[#allocation2 + $0x8] sm:$0xff]
    %v60 = vld [vmem:[#allocation5] sm:$0xff]
    %v61 = vld [vmem:[#allocation5 + $0x8] sm:$0xff]
    %v62 = vld [vmem:[#allocation5 + $0x10] sm:$0xff]
    %v63 = vld [vmem:[#allocation5 + $0x18] sm:$0xff]
    %vm64 = vcmask 261120
    %v66 = vsel %vm64, %v58, 0
    %v69 = vsel %vm64, %v59, 0
    %71 = vmatprep.subr.mxu0 0.0
    %72 = vmatpush1.msra.mxu0 %v60
    %73 = vmatprep.subr.mxu0 0.0
    %74 = vmatpush1.msra.mxu0 %v61
    %75 = vmatprep.subr.mxu0 0.0
    %76 = vmatpush1.msra.mxu0 %v62
    %77 = vmatprep.subr.mxu0 0.0
    %78 = vmatpush1.msra.mxu0 %v63
    %79 = vmatprep.subr.mxu0 0.0
    %80 = vmatpush1.msra.mxu0 0.0
    %81 = vmatprep.subr.mxu0 0.0
    %82 = vmatpush1.msra.mxu0 0.0
    %83 = vmatprep.subr.mxu0 0.0
    %84 = vmatpush1.msra.mxu0 0.0
    %85 = vmatprep.subr.mxu0 0.0
    %86 = vmatpush1.msra.mxu0 0.0
    %87 = vmatprep.subr.mxu0 0.0
    %88 = vmatpush1.msra.mxu0 0.0
    %89 = vmatprep.subr.mxu0 0.0
    %90 = vmatpush1.msra.mxu0 0.0
    %91 = vmatprep.subr.mxu0 0.0
    %92 = vmatpush1.msra.mxu0 0.0
    %93 = vmatprep.subr.mxu0 0.0
    %94 = vmatpush1.msra.mxu0 0.0
    %95 = vmatprep.subr.mxu0 0.0
    %96 = vmatpush1.msra.mxu0 0.0
    %97 = vmatprep.subr.mxu0 0.0
    %98 = vmatpush1.msra.mxu0 0.0
    %99 = vmatprep.subr.mxu0 0.0
    %100 = vmatpush1.msra.mxu0 0.0
    %101 = vmatprep.subr.mxu0 0.0
    %102 = vmatpush1.msra.mxu0 0.0
    %103 = vmatprep.subr.mxu0 0.0
    %104 = vmatpush1.msra.mxu0 0.0
    %105 = vmatprep.subr.mxu0 0.0
    %106 = vmatpush1.msra.mxu0 0.0
    %107 = vmatprep.subr.mxu0 0.0
    %108 = vmatpush1.msra.mxu0 0.0
    %109 = vmatprep.subr.mxu0 0.0
    %110 = vmatpush1.msra.mxu0 0.0
    %111 = vmatprep.subr.mxu0 0.0
    %112 = vmatpush1.msra.mxu0 0.0
    %113 = vmatprep.subr.mxu0 0.0
    %114 = vmatpush1.msra.mxu0 0.0
    %115 = vmatprep.subr.mxu0 0.0
    %116 = vmatpush1.msra.mxu0 0.0
    %117 = vmatprep.subr.mxu0 0.0
    %118 = vmatpush1.msra.mxu0 0.0
    %119 = vmatprep.subr.mxu0 0.0
    %120 = vmatpush1.msra.mxu0 0.0
    %121 = vmatprep.subr.mxu0 0.0
    %122 = vmatpush1.msra.mxu0 0.0
    %123 = vmatprep.subr.mxu0 0.0
    %124 = vmatpush1.msra.mxu0 0.0
    %125 = vmatprep.subr.mxu0 0.0
    %126 = vmatpush1.msra.mxu0 0.0
    %127 = vmatprep.subr.mxu0 0.0
    %128 = vmatpush1.msra.mxu0 0.0
    %129 = vmatprep.subr.mxu0 0.0
    %130 = vmatpush1.msra.mxu0 0.0
    %131 = vmatprep.subr.mxu0 0.0
    %132 = vmatpush1.msra.mxu0 0.0
    %133 = vmatprep.subr.mxu0 0.0
    %134 = vmatpush1.msra.mxu0 0.0
    %135 = vmatprep.mubr.f32.mxu0 0.0
    %136 = vmatmul.mubr.f32.gmra.mrb[0].mxu0 %v66
    %v137 = vpop.f32.mrb[0].mxu0
    %v138 = vadd.f32 0.0, %v137
    %v139 = vpop.f32.mrb[0].mxu0
    %140 = vmatprep.mubr.f32.mxu0 0.0
    %141 = vmatmul.mubr.f32.gmra.mrb[0].mxu0 %v69
    %v142 = vpop.f32.mrb[0].mxu0
    %v143 = vadd.f32 0.0, %v142
    %v144 = vpop.f32.mrb[0].mxu0
    %145 = vdwg.mxu0
    %v146 = vadd.f32 %v56, %v138
    %v147 = vadd.f32 %v57, %v143
    %148 = vst [vmem:[#allocation7] sm:$0xff] %v146
    %149 = vst [vmem:[#allocation7 + $0x8] sm:$0xff] %v147
    // Predicated region
    $region26: #{tpu_custom_call.1} parent=1 // pred_check
      _
    $region27: #{tpu_custom_call.1} parent=1 // pred_check_branch
      %151 = sbr.rel (0) target = $region29
    $region28: #{tpu_custom_call.1} parent=1 // pred_region
      %s153 = ssub.s32 256, 256
      %154 = vsyncadd [#allocation4], %s153
      %s155 = sshll.u32 [#allocation7], 4
      %s156 = int_to_ptr.vmem [resolvable:$true] %s155
      %161 = dma.vmem_to_hbm [thread:$0]  %s156, 256, %s3, [#allocation4], 128, 128, 8
    $region29: #{tpu_custom_call.1} parent=1 // pred_fallthru
      _
    // Predicated region
    $region30: #{tpu_custom_call.1} parent=1 // pred_check
      _
    $region31: #{tpu_custom_call.1} parent=1 // pred_check_branch
      %163 = sbr.rel (0) target = $region33
    $region32: #{tpu_custom_call.1} parent=1 // pred_region
      %164 = dma.done [#allocation4], 256
    $region33: #{tpu_custom_call.1} parent=1 // pred_fallthru
      _
    %165 = vsyncpa [#allocation3], 1
    %166 = vsyncpa [#allocation6], 1
    %167 = vsyncpa [#allocation4], 1

</llo_original>
